<compile_context>
chip_gen: v6e
topology: v6e:2x2x1
jax: 0.10.0
libtpu: 0.0.40
codegen_flags: <defaults>
</compile_context>

<pallas_src>
import math

import jax
import jax.numpy as jnp
from jax.experimental import pallas as pl
from jax.experimental.pallas import tpu as pltpu


def _linear_gater_kernel(x_ref, w_ref, b_ref, logits_ref, probs_ref):
    # x_ref:      (R, P*D) packed row tile (P original rows per packed row), VMEM
    # w_ref:      (P*D, P) block-diagonal weight, VMEM-resident across grid steps
    # b_ref:      (1, 1)   bias scalar in SMEM
    # logits_ref: (R, P)   logits tile
    # probs_ref:  (R, P)   sigmoid(logits) tile
    logits = jnp.dot(x_ref[...], w_ref[...], preferred_element_type=jnp.float32)
    logits = logits + b_ref[0, 0].astype(jnp.float32)
    probs = jax.nn.sigmoid(logits)            # EUP; free slot vs. MXU/vld
    logits_ref[...] = logits.astype(logits_ref.dtype)
    probs_ref[...] = probs.astype(probs_ref.dtype)


def _round_up(x, m):
    return ((x + m - 1) // m) * m


def _pack_factor(n, d, max_p=32, max_packed_width=8192):
    """Largest P in {32,16,8,4,2,1} with P | n and P*D not absurdly wide."""
    p = max_p
    while p > 1 and (n % p != 0 or p * d > max_packed_width):
        p //= 2
    return max(p, 1)


def linear_gater(x, weight, bias, *, rows_per_tile=32768):
    """LinearGater forward.

    x: (..., D); weight: (1, D) (PyTorch nn.Linear layout); bias: (1,).
    Returns (logits, probs), each (..., 1), in promote_types(x.dtype, weight.dtype).
    """
    orig_shape = x.shape
    d = orig_shape[-1]
    n = math.prod(orig_shape[:-1]) if len(orig_shape) > 1 else 1
    out_dtype = jnp.promote_types(x.dtype, weight.dtype)

    # --- wrapper-side packing (all reshapes are contiguous => free, no HBM copy) ---
    p = _pack_factor(n, d)
    n_pr = n // p              # packed rows
    pw = p * d                 # packed lane width
    x_pk = x.reshape(n_pr, pw)

    # Block-diagonal weight (P*D, P): column g holds w in rows [g*D, (g+1)*D).
    w_flat = weight.reshape(d).astype(jnp.float32)
    w_bd = (jnp.eye(p, dtype=jnp.float32)[:, None, :]
            * w_flat[None, :, None]).reshape(pw, p)
    b = bias.reshape(1, 1).astype(jnp.float32)

    # --- tile sizing: target ~rows_per_tile original rows per grid step ---
    r_tile = max(8, _round_up(max(1, rows_per_tile // p), 8))
    if n_pr <= r_tile:
        r_tile = n_pr          # single tile; block == full array (always legal)
        num_tiles = 1
    else:
        num_tiles = pl.cdiv(n_pr, r_tile)   # ragged tail handled by Pallas; no jnp.pad

    grid_spec = pltpu.PrefetchScalarGridSpec(
        num_scalar_prefetch=0,
        grid=(num_tiles,),
        in_specs=[
            pl.BlockSpec((r_tile, pw), lambda i: (i, 0)),        # packed x row tiles
            pl.BlockSpec((pw, p), lambda i: (0, 0)),             # resident weight
            pl.BlockSpec(memory_space=pltpu.MemorySpace.SMEM),   # bias scalar
        ],
        out_specs=(
            pl.BlockSpec((r_tile, p), lambda i: (i, 0)),
            pl.BlockSpec((r_tile, p), lambda i: (i, 0)),
        ),
    )
    out_shapes = (
        jax.ShapeDtypeStruct((n_pr, p), out_dtype),
        jax.ShapeDtypeStruct((n_pr, p), out_dtype),
    )
    cost = pl.CostEstimate(
        flops=2 * n_pr * pw * p,                       # issued MXU work
        transcendentals=n,                             # one sigmoid per row
        bytes_accessed=(x_pk.size * x_pk.dtype.itemsize
                        + 2 * n * out_dtype.itemsize
                        + w_bd.size * 4),
    )

    logits_pk, probs_pk = pl.pallas_call(
        _linear_gater_kernel,
        out_shape=out_shapes,
        grid_spec=grid_spec,
        compiler_params=pltpu.CompilerParams(
            dimension_semantics=("parallel",),          # shard row tiles across TCs
            vmem_limit_bytes=48 * 1024 * 1024,          # v7x-safe; actual use ~10-20 MiB
        ),
        cost_estimate=cost,
    )(x_pk, w_bd, b)

    out_shape = orig_shape[:-1] + (1,)
    return logits_pk.reshape(out_shape), probs_pk.reshape(out_shape)


if __name__ == "__main__":
    embedding_dim = 32
    batch, seq = 2, 8

    key = jax.random.PRNGKey(0)
    kx, kw, kb = jax.random.split(key, 3)

    # Deterministic parameter init mimicking nn.Linear: U(-1/sqrt(D), 1/sqrt(D)).
    bound = 1.0 / (embedding_dim ** 0.5)
    weight = jax.random.uniform(kw, (1, embedding_dim), jnp.float32, -bound, bound)
    bias = jax.random.uniform(kb, (1,), jnp.float32, -bound, bound)

    x = jax.random.normal(kx, (batch, seq, embedding_dim), jnp.float32)

    logits, probs = linear_gater(x, weight, bias)
    jax.block_until_ready((logits, probs))

    # Pure-JAX reference check.
    ref_logits = x @ weight.T + bias
    ref_probs = jax.nn.sigmoid(ref_logits)
    assert logits.shape == (batch, seq, 1)
    assert probs.shape == (batch, seq, 1)
    assert jnp.allclose(logits, ref_logits, atol=1e-5)
    assert jnp.allclose(probs, ref_probs, atol=1e-5)

    print("KERNEL_OK")
</pallas_src>

<mosaic_0001>
module attributes {stable_mosaic.version = 11 : i64} {
  func.func @_linear_gater_kernel(%arg0: i32, %arg1: memref<1x512xf32, #tpu.memory_space<vmem>>, %arg2: memref<512x16xf32, #tpu.memory_space<vmem>>, %arg3: memref<1x1xf32, #tpu.memory_space<smem>>, %arg4: memref<1x16xf32, #tpu.memory_space<vmem>>, %arg5: memref<1x16xf32, #tpu.memory_space<vmem>>) attributes {dimension_semantics = [#tpu.dimension_semantics<parallel>], iteration_bounds = array<i64: 1>, scalar_prefetch = 0 : i64, scratch_operands = 0 : i64, tpu.core_type = #tpu.core_type<tc>, window_params = [{transform_indices = @transform_0, window_bounds = array<i64: 1, 512>}, {pipeline_mode = #tpu.pipeline_mode<synchronous>, transform_indices = @transform_1, window_bounds = array<i64: 512, 16>}, {transform_indices = @transform_2, window_bounds = array<i64: 1, 1>}, {transform_indices = @transform_3, window_bounds = array<i64: 1, 16>}, {transform_indices = @transform_4, window_bounds = array<i64: 1, 16>}]} {
    %c0 = arith.constant 0 : index
    %c0_0 = arith.constant 0 : index
    %0 = vector.load %arg1[%c0, %c0_0] : memref<1x512xf32, #tpu.memory_space<vmem>>, vector<1x512xf32>
    %c0_1 = arith.constant 0 : index
    %c0_2 = arith.constant 0 : index
    %1 = vector.load %arg2[%c0_1, %c0_2] : memref<512x16xf32, #tpu.memory_space<vmem>>, vector<512x16xf32>
    %cst = arith.constant dense<0.000000e+00> : vector<1x16xf32>
    %2 = tpu.matmul %0, %1, %cst {dimension_numbers = #tpu.dot_dimension_numbers<[1], [0], [0], [1], [0, 0, 1, 1], [], []>} : vector<1x512xf32>, vector<512x16xf32>, vector<1x16xf32> -> vector<1x16xf32>
    %c0_3 = arith.constant 0 : index
    %c0_4 = arith.constant 0 : index
    %3 = memref.load %arg3[%c0_3, %c0_4] : memref<1x1xf32, #tpu.memory_space<smem>>
    %4 = vector.broadcast %3 : f32 to vector<1x16xf32>
    %5 = arith.addf %2, %4 : vector<1x16xf32>
    %6 = arith.negf %5 : vector<1x16xf32>
    %7 = math.exp %6 : vector<1x16xf32>
    %cst_5 = arith.constant 1.000000e+00 : f32
    %8 = vector.broadcast %cst_5 : f32 to vector<1x16xf32>
    %9 = arith.addf %8, %7 : vector<1x16xf32>
    %10 = arith.divf %8, %9 : vector<1x16xf32>
    %c0_6 = arith.constant 0 : index
    %c0_7 = arith.constant 0 : index
    %11 = vector.load %arg4[%c0_6, %c0_7] : memref<1x16xf32, #tpu.memory_space<vmem>>, vector<1x16xf32>
    tpu.vector_store %arg4[%c0_6, %c0_7], %5 {strides = array<i32>} : memref<1x16xf32, #tpu.memory_space<vmem>>, vector<1x16xf32>,
    %c0_8 = arith.constant 0 : index
    %c0_9 = arith.constant 0 : index
    %12 = vector.load %arg5[%c0_8, %c0_9] : memref<1x16xf32, #tpu.memory_space<vmem>>, vector<1x16xf32>
    tpu.vector_store %arg5[%c0_8, %c0_9], %10 {strides = array<i32>} : memref<1x16xf32, #tpu.memory_space<vmem>>, vector<1x16xf32>,
    return
  }
  func.func @transform_0(%arg0: i32) -> (i32, i32) {
    %c0_i32 = arith.constant 0 : i32
    %c0_i32_0 = arith.constant 0 : i32
    return %arg0, %c0_i32 : i32, i32
  }
  func.func @transform_1(%arg0: i32) -> (i32, i32) {
    %c0_i32 = arith.constant 0 : i32
    %c0_i32_0 = arith.constant 0 : i32
    %c0_i32_1 = arith.constant 0 : i32
    return %c0_i32, %c0_i32_0 : i32, i32
  }
  func.func @transform_2(%arg0: i32) -> (i32, i32) {
    %c0_i32 = arith.constant 0 : i32
    %c0_i32_0 = arith.constant 0 : i32
    %c0_i32_1 = arith.constant 0 : i32
    return %c0_i32, %c0_i32_0 : i32, i32
  }
  func.func @transform_3(%arg0: i32) -> (i32, i32) {
    %c0_i32 = arith.constant 0 : i32
    %c0_i32_0 = arith.constant 0 : i32
    return %arg0, %c0_i32 : i32, i32
  }
  func.func @transform_4(%arg0: i32) -> (i32, i32) {
    %c0_i32 = arith.constant 0 : i32
    %c0_i32_0 = arith.constant 0 : i32
    return %arg0, %c0_i32 : i32, i32
  }
}

</mosaic_0001>

<llo_original>
// kernel: tpu_custom_call.1
$region0: #{tpu_custom_call.1}
  #allocation0 [shape = 'u32[]', space=smem, size = 0x4, offset = 0x4, fixed_abs, tag = 'smem constant byte address 0x4 - core index']
  #allocation1 [shape = 'u32[144,128]{1,0:T(1,128)}', space=vmem, size = 0x12000, scoped, tag = 'internal scratch']
  #allocation2 [shape = 'f32[1,1]{1,0:T(1,128)S(6)}', space=smem, size = 0x200, scoped, tag = 'scoped memory for tpu_custom_call.1']
  %s0 = inlined_call_operand.vmem [shape: f32[1,512], index: 0, kind: input, shape index: {}]
  %s1 = inlined_call_operand.vmem [shape: f32[512,16], index: 1, kind: input, shape index: {}]
  %s2 = inlined_call_operand.<no memory space> [shape: f32[1,1], index: 2, kind: input, shape index: {}]
  %s3 = inlined_call_operand.hbm [shape: f32[1,16], index: 3, kind: output, shape index: {0}]
  %s4 = inlined_call_operand.hbm [shape: f32[1,16], index: 4, kind: output, shape index: {1}]
  %5 = xla_tuple %s3, %s4
  %s6 = sld [smem:[#allocation0]]
  $region30: #{tpu_custom_call.1} parent=0
    _
  %s8 = ssub.s32 1, %s6
  %s9 = scalar_select 0, %s8, %s6
  %10 = sst [smem:[#allocation2]] %s2
  $region1: #{tpu_custom_call.1} parent=0
    #allocation3 [shape = 'u8[512]{0}', space=vmem, size = 0x400, scoped, tag = 'output window, operand 0, single buffered']
    #allocation4 [shape = 's32[1]{0}', space=sflag, size = 0x4, scoped, tag = 'scoped memory for tpu_custom_call.1']
    #allocation5 [shape = 'u8[512]{0}', space=vmem, size = 0x400, scoped, tag = 'output window, operand 1, single buffered']
    #allocation6 [shape = 's32[1]{0}', space=sflag, size = 0x4, scoped, tag = 'scoped memory for tpu_custom_call.1']
    %11 = vsyncpa [#allocation4], 0
    %12 = vsyncpa [#allocation6], 0
    // Predicated region
    $region2: #{tpu_custom_call.1} parent=1 // pred_check
      _
    $region3: #{tpu_custom_call.1} parent=1 // pred_check_branch
      %14 = sbr.rel (0) target = $region5
    $region4: #{tpu_custom_call.1} parent=1 // pred_region
      _
    $region5: #{tpu_custom_call.1} parent=1 // pred_fallthru
      _
    // Predicated region
    $region6: #{tpu_custom_call.1} parent=1 // pred_check
      _
    $region7: #{tpu_custom_call.1} parent=1 // pred_check_branch
      %16 = sbr.rel (0) target = $region9
    $region8: #{tpu_custom_call.1} parent=1 // pred_region
      _
    $region9: #{tpu_custom_call.1} parent=1 // pred_fallthru
      _
    // Predicated region
    $region10: #{tpu_custom_call.1} parent=1 // pred_check
      _
    $region11: #{tpu_custom_call.1} parent=1 // pred_check_branch
      %18 = sbr.rel (0) target = $region13
    $region12: #{tpu_custom_call.1} parent=1 // pred_region
      _
    $region13: #{tpu_custom_call.1} parent=1 // pred_fallthru
      _
    %v19 = vld [vmem:[%s0] sm:$0xf]
    %v20 = vld [vmem:[%s1] sm:$0xff]
    %v21 = vld [vmem:[%s1 + $0x8] sm:$0xff]
    %v22 = vld [vmem:[%s1 + $0x10] sm:$0xff]
    %v23 = vld [vmem:[%s1 + $0x18] sm:$0xff]
    %v24 = vld [vmem:[%s1 + $0x20] sm:$0xff]
    %v25 = vld [vmem:[%s1 + $0x28] sm:$0xff]
    %v26 = vld [vmem:[%s1 + $0x30] sm:$0xff]
    %v27 = vld [vmem:[%s1 + $0x38] sm:$0xff]
    %v28 = vld [vmem:[%s1 + $0x40] sm:$0xff]
    %v29 = vld [vmem:[%s1 + $0x48] sm:$0xff]
    %v30 = vld [vmem:[%s1 + $0x50] sm:$0xff]
    %v31 = vld [vmem:[%s1 + $0x58] sm:$0xff]
    %v32 = vld [vmem:[%s1 + $0x60] sm:$0xff]
    %v33 = vld [vmem:[%s1 + $0x68] sm:$0xff]
    %v34 = vld [vmem:[%s1 + $0x70] sm:$0xff]
    %v35 = vld [vmem:[%s1 + $0x78] sm:$0xff]
    %v36 = vld [vmem:[%s1 + $0x80] sm:$0xff]
    %v37 = vld [vmem:[%s1 + $0x88] sm:$0xff]
    %v38 = vld [vmem:[%s1 + $0x90] sm:$0xff]
    %v39 = vld [vmem:[%s1 + $0x98] sm:$0xff]
    %v40 = vld [vmem:[%s1 + $0xa0] sm:$0xff]
    %v41 = vld [vmem:[%s1 + $0xa8] sm:$0xff]
    %v42 = vld [vmem:[%s1 + $0xb0] sm:$0xff]
    %v43 = vld [vmem:[%s1 + $0xb8] sm:$0xff]
    %v44 = vld [vmem:[%s1 + $0xc0] sm:$0xff]
    %v45 = vld [vmem:[%s1 + $0xc8] sm:$0xff]
    %v46 = vld [vmem:[%s1 + $0xd0] sm:$0xff]
    %v47 = vld [vmem:[%s1 + $0xd8] sm:$0xff]
    %v48 = vld [vmem:[%s1 + $0xe0] sm:$0xff]
    %v49 = vld [vmem:[%s1 + $0xe8] sm:$0xff]
    %v50 = vld [vmem:[%s1 + $0xf0] sm:$0xff]
    %v51 = vld [vmem:[%s1 + $0xf8] sm:$0xff]
    %v52 = vld [vmem:[%s1 + $0x100] sm:$0xff]
    %v53 = vld [vmem:[%s1 + $0x108] sm:$0xff]
    %v54 = vld [vmem:[%s1 + $0x110] sm:$0xff]
    %v55 = vld [vmem:[%s1 + $0x118] sm:$0xff]
    %v56 = vld [vmem:[%s1 + $0x120] sm:$0xff]
    %v57 = vld [vmem:[%s1 + $0x128] sm:$0xff]
    %v58 = vld [vmem:[%s1 + $0x130] sm:$0xff]
    %v59 = vld [vmem:[%s1 + $0x138] sm:$0xff]
    %v60 = vld [vmem:[%s1 + $0x140] sm:$0xff]
    %v61 = vld [vmem:[%s1 + $0x148] sm:$0xff]
    %v62 = vld [vmem:[%s1 + $0x150] sm:$0xff]
    %v63 = vld [vmem:[%s1 + $0x158] sm:$0xff]
    %v64 = vld [vmem:[%s1 + $0x160] sm:$0xff]
    %v65 = vld [vmem:[%s1 + $0x168] sm:$0xff]
    %v66 = vld [vmem:[%s1 + $0x170] sm:$0xff]
    %v67 = vld [vmem:[%s1 + $0x178] sm:$0xff]
    %v68 = vld [vmem:[%s1 + $0x180] sm:$0xff]
    %v69 = vld [vmem:[%s1 + $0x188] sm:$0xff]
    %v70 = vld [vmem:[%s1 + $0x190] sm:$0xff]
    %v71 = vld [vmem:[%s1 + $0x198] sm:$0xff]
    %v72 = vld [vmem:[%s1 + $0x1a0] sm:$0xff]
    %v73 = vld [vmem:[%s1 + $0x1a8] sm:$0xff]
    %v74 = vld [vmem:[%s1 + $0x1b0] sm:$0xff]
    %v75 = vld [vmem:[%s1 + $0x1b8] sm:$0xff]
    %v76 = vld [vmem:[%s1 + $0x1c0] sm:$0xff]
    %v77 = vld [vmem:[%s1 + $0x1c8] sm:$0xff]
    %v78 = vld [vmem:[%s1 + $0x1d0] sm:$0xff]
    %v79 = vld [vmem:[%s1 + $0x1d8] sm:$0xff]
    %v80 = vld [vmem:[%s1 + $0x1e0] sm:$0xff]
    %v81 = vld [vmem:[%s1 + $0x1e8] sm:$0xff]
    %v82 = vld [vmem:[%s1 + $0x1f0] sm:$0xff]
    %v83 = vld [vmem:[%s1 + $0x1f8] sm:$0xff]
    %s84 = sld [smem:[#allocation2]]
    %v85 = vstv %s84
    %v87 = vlaneseq
    %v88 = vshrl.u32 %v87, 7
    %v89 = vsub.s32 0, %v88
    %v90 = vrot.slane %v19, %v89
    %v91 = vlaneseq
    %v92 = vshrl.u32 %v91, 7
    %v93 = vsub.s32 1, %v92
    %v94 = vrot.slane %v19, %v93
    %v95 = vlaneseq
    %v96 = vshrl.u32 %v95, 7
    %v97 = vsub.s32 2, %v96
    %v98 = vrot.slane %v19, %v97
    %v99 = vlaneseq
    %v100 = vshrl.u32 %v99, 7
    %v101 = vsub.s32 3, %v100
    %v102 = vrot.slane %v19, %v101
    %107 = vmatprep.subr.mxu0 0.0
    %108 = vmatpush1.msra.mxu0 %v35
    %109 = vmatprep.subr.mxu0 0.0
    %110 = vmatpush1.msra.mxu0 %v34
    %111 = vmatprep.subr.mxu0 0.0
    %112 = vmatpush1.msra.mxu0 %v33
    %113 = vmatprep.subr.mxu0 0.0
    %114 = vmatpush1.msra.mxu0 %v32
    %115 = vmatprep.subr.mxu0 0.0
    %116 = vmatpush1.msra.mxu0 %v31
    %117 = vmatprep.subr.mxu0 0.0
    %118 = vmatpush1.msra.mxu0 %v30
    %119 = vmatprep.subr.mxu0 0.0
    %120 = vmatpush1.msra.mxu0 %v29
    %121 = vmatprep.subr.mxu0 0.0
    %122 = vmatpush1.msra.mxu0 %v28
    %123 = vmatprep.subr.mxu0 0.0
    %124 = vmatpush1.msra.mxu0 %v27
    %125 = vmatprep.subr.mxu0 0.0
    %126 = vmatpush1.msra.mxu0 %v26
    %127 = vmatprep.subr.mxu0 0.0
    %128 = vmatpush1.msra.mxu0 %v25
    %129 = vmatprep.subr.mxu0 0.0
    %130 = vmatpush1.msra.mxu0 %v24
    %131 = vmatprep.subr.mxu0 0.0
    %132 = vmatpush1.msra.mxu0 %v23
    %133 = vmatprep.subr.mxu0 0.0
    %134 = vmatpush1.msra.mxu0 %v22
    %135 = vmatprep.subr.mxu0 0.0
    %136 = vmatpush1.msra.mxu0 %v21
    %137 = vmatprep.subr.mxu0 0.0
    %138 = vmatpush1.msra.mxu0 %v20
    %139 = vmatprep.subr.mxu0 0.0
    %140 = vmatpush2.msra.mxu0 %v51
    %141 = vmatprep.subr.mxu0 0.0
    %142 = vmatpush2.msra.mxu0 %v50
    %143 = vmatprep.subr.mxu0 0.0
    %144 = vmatpush2.msra.mxu0 %v49
    %145 = vmatprep.subr.mxu0 0.0
    %146 = vmatpush2.msra.mxu0 %v48
    %147 = vmatprep.subr.mxu0 0.0
    %148 = vmatpush2.msra.mxu0 %v47
    %149 = vmatprep.subr.mxu0 0.0
    %150 = vmatpush2.msra.mxu0 %v46
    %151 = vmatprep.subr.mxu0 0.0
    %152 = vmatpush2.msra.mxu0 %v45
    %153 = vmatprep.subr.mxu0 0.0
    %154 = vmatpush2.msra.mxu0 %v44
    %155 = vmatprep.subr.mxu0 0.0
    %156 = vmatpush2.msra.mxu0 %v43
    %157 = vmatprep.subr.mxu0 0.0
    %158 = vmatpush2.msra.mxu0 %v42
    %159 = vmatprep.subr.mxu0 0.0
    %160 = vmatpush2.msra.mxu0 %v41
    %161 = vmatprep.subr.mxu0 0.0
    %162 = vmatpush2.msra.mxu0 %v40
    %163 = vmatprep.subr.mxu0 0.0
    %164 = vmatpush2.msra.mxu0 %v39
    %165 = vmatprep.subr.mxu0 0.0
    %166 = vmatpush2.msra.mxu0 %v38
    %167 = vmatprep.subr.mxu0 0.0
    %168 = vmatpush2.msra.mxu0 %v37
    %169 = vmatprep.subr.mxu0 0.0
    %170 = vmatpush2.msra.mxu0 %v36
    %171 = vmatprep.mubr.f32.mxu0 %v94
    %172 = vmatmul.mubr.f32.gmra.mxu0 %v90
    %v173 = vpop.f32.mrf.mxu0
    %v174 = vadd.f32 %v85, %v173
    %v175 = vpop.f32.mrf.mxu0
    %176 = vdwg.mxu0
    %177 = vmatprep.subr.mxu0 0.0
    %178 = vmatpush1.msra.mxu0 %v67
    %179 = vmatprep.subr.mxu0 0.0
    %180 = vmatpush1.msra.mxu0 %v66
    %181 = vmatprep.subr.mxu0 0.0
    %182 = vmatpush1.msra.mxu0 %v65
    %183 = vmatprep.subr.mxu0 0.0
    %184 = vmatpush1.msra.mxu0 %v64
    %185 = vmatprep.subr.mxu0 0.0
    %186 = vmatpush1.msra.mxu0 %v63
    %187 = vmatprep.subr.mxu0 0.0
    %188 = vmatpush1.msra.mxu0 %v62
    %189 = vmatprep.subr.mxu0 0.0
    %190 = vmatpush1.msra.mxu0 %v61
    %191 = vmatprep.subr.mxu0 0.0
    %192 = vmatpush1.msra.mxu0 %v60
    %193 = vmatprep.subr.mxu0 0.0
    %194 = vmatpush1.msra.mxu0 %v59
    %195 = vmatprep.subr.mxu0 0.0
    %196 = vmatpush1.msra.mxu0 %v58
    %197 = vmatprep.subr.mxu0 0.0
    %198 = vmatpush1.msra.mxu0 %v57
    %199 = vmatprep.subr.mxu0 0.0
    %200 = vmatpush1.msra.mxu0 %v56
    %201 = vmatprep.subr.mxu0 0.0
    %202 = vmatpush1.msra.mxu0 %v55
    %203 = vmatprep.subr.mxu0 0.0
    %204 = vmatpush1.msra.mxu0 %v54
    %205 = vmatprep.subr.mxu0 0.0
    %206 = vmatpush1.msra.mxu0 %v53
    %207 = vmatprep.subr.mxu0 0.0
    %208 = vmatpush1.msra.mxu0 %v52
    %209 = vmatprep.subr.mxu0 0.0
    %210 = vmatpush2.msra.mxu0 %v83
    %211 = vmatprep.subr.mxu0 0.0
    %212 = vmatpush2.msra.mxu0 %v82
    %213 = vmatprep.subr.mxu0 0.0
    %214 = vmatpush2.msra.mxu0 %v81
    %215 = vmatprep.subr.mxu0 0.0
    %216 = vmatpush2.msra.mxu0 %v80
    %217 = vmatprep.subr.mxu0 0.0
    %218 = vmatpush2.msra.mxu0 %v79
    %219 = vmatprep.subr.mxu0 0.0
    %220 = vmatpush2.msra.mxu0 %v78
    %221 = vmatprep.subr.mxu0 0.0
    %222 = vmatpush2.msra.mxu0 %v77
    %223 = vmatprep.subr.mxu0 0.0
    %224 = vmatpush2.msra.mxu0 %v76
    %225 = vmatprep.subr.mxu0 0.0
    %226 = vmatpush2.msra.mxu0 %v75
    %227 = vmatprep.subr.mxu0 0.0
    %228 = vmatpush2.msra.mxu0 %v74
    %229 = vmatprep.subr.mxu0 0.0
    %230 = vmatpush2.msra.mxu0 %v73
    %231 = vmatprep.subr.mxu0 0.0
    %232 = vmatpush2.msra.mxu0 %v72
    %233 = vmatprep.subr.mxu0 0.0
    %234 = vmatpush2.msra.mxu0 %v71
    %235 = vmatprep.subr.mxu0 0.0
    %236 = vmatpush2.msra.mxu0 %v70
    %237 = vmatprep.subr.mxu0 0.0
    %238 = vmatpush2.msra.mxu0 %v69
    %239 = vmatprep.subr.mxu0 0.0
    %240 = vmatpush2.msra.mxu0 %v68
    %241 = vmatprep.mubr.f32.mxu0 %v102
    %242 = vmatmul.mubr.f32.gmra.mxu0 %v98
    %v243 = vpop.f32.mrf.mxu0
    %v244 = vadd.f32 %v174, %v243
    %v245 = vpop.f32.mrf.mxu0
    %246 = vdwg.mxu0
    %v247 = vxor.u32 %v244, 2147483648
    %v248 = vmul.f32 %v247, 1.442695
    %v249 = vpow.pop %v248
    %v250 = vadd.f32 %v249, 1.0
    %v251 = vrcp.pop %v250
    %v252 = vmul.f32 1.0, %v251
    %vm253 = vcmask 122880
    %254 = vst.msk [vmem:[#allocation3] sm:$0x1] %vm253, %v244
    %255 = vst.msk [vmem:[#allocation5] sm:$0x1] %vm253, %v252
    // Predicated region
    $region14: #{tpu_custom_call.1} parent=1 // pred_check
      _
    $region15: #{tpu_custom_call.1} parent=1 // pred_check_branch
      %257 = sbr.rel (0) target = $region17
    $region16: #{tpu_custom_call.1} parent=1 // pred_region
      %s259 = ssub.s32 16, 16
      %260 = vsyncadd [#allocation4], %s259
      %s262 = sshll.u32 [#allocation3], 4
      %s263 = int_to_ptr.vmem [resolvable:$true] %s262
      %265 = dma.vmem_to_hbm [thread:$0]  %s263, 16, %s3, [#allocation4]
    $region17: #{tpu_custom_call.1} parent=1 // pred_fallthru
      _
    // Predicated region
    $region18: #{tpu_custom_call.1} parent=1 // pred_check
      _
    $region19: #{tpu_custom_call.1} parent=1 // pred_check_branch
      %267 = sbr.rel (0) target = $region21
    $region20: #{tpu_custom_call.1} parent=1 // pred_region
      %s269 = ssub.s32 16, 16
      %270 = vsyncadd [#allocation6], %s269
      %s272 = sshll.u32 [#allocation5], 4
      %s273 = int_to_ptr.vmem [resolvable:$true] %s272
      %275 = dma.vmem_to_hbm [thread:$0]  %s273, 16, %s4, [#allocation6]
    $region21: #{tpu_custom_call.1} parent=1 // pred_fallthru
      _
    // Predicated region
    $region22: #{tpu_custom_call.1} parent=1 // pred_check
      _
    $region23: #{tpu_custom_call.1} parent=1 // pred_check_branch
      %277 = sbr.rel (0) target = $region25
    $region24: #{tpu_custom_call.1} parent=1 // pred_region
      %278 = dma.done [#allocation4], 16
    $region25: #{tpu_custom_call.1} parent=1 // pred_fallthru
      _
    // Predicated region
    $region26: #{tpu_custom_call.1} parent=1 // pred_check
      _
    $region27: #{tpu_custom_call.1} parent=1 // pred_check_branch
      %280 = sbr.rel (0) target = $region29
    $region28: #{tpu_custom_call.1} parent=1 // pred_region
      %281 = dma.done [#allocation6], 16
    $region29: #{tpu_custom_call.1} parent=1 // pred_fallthru
      _
    %282 = vsyncpa [#allocation4], 1
    %283 = vsyncpa [#allocation6], 1

</llo_original>
